<compile_context>
chip_gen: v7x
topology: tpu7x:2x2x1
jax: 0.10.0
libtpu: 0.0.40
codegen_flags: <defaults>
</compile_context>

<pallas_src>
import jax
import jax.numpy as jnp
import numpy as np
from jax.experimental import pallas as pl
from jax.experimental.pallas import tpu as pltpu

ALPHA = 0.2  # LeakyReLU negative slope


def _feature_attention_kernel(x_ref, w_ref, ba_ref, bias_ref, o_ref):
    """x_ref / o_ref blocks: (bt, W, K) — the module's native layout (no wrapper transposes)."""
    bt, W, K = x_ref.shape
    E = w_ref.shape[2]

    x = x_ref[...]                                  # (bt, W, K)
    w1 = w_ref[0]                                   # (W, E)
    w2 = w_ref[1]                                   # (W, E)
    blin = ba_ref[0]                                # (E,)
    a_row = ba_ref[1]                               # (E,)
    bias = bias_ref[...]                            # (K, K)

    # --- Node projections for the whole tile: one MXU push per weight, M = bt*K rows. ---
    #   u[b, i, :] = x[b, :, i] @ W1 + b_lin ;  v[b, j, :] = x[b, :, j] @ W2
    xt = jnp.transpose(x, (0, 2, 1))                # (bt, K, W)  one minor-dim transpose per tile
    x2d = xt.reshape(bt * K, W)                     # flatten batch into MXU rows
    u = jnp.dot(x2d, w1, preferred_element_type=jnp.float32) + blin   # (bt*K, E)
    v = jnp.dot(x2d, w2, preferred_element_type=jnp.float32)          # (bt*K, E)
    u = u.reshape(bt, K, E)
    v = v.reshape(bt, K, E)

    # --- GATv2 pairwise scores (b_lin folded into u exactly once). ---
    #   z[b, i, j, :] = leakyrelu(u[b, i, :] + v[b, j, :]) ;  e[b, i, j] = z . a + bias[i, j]
    z = u[:, :, None, :] + v[:, None, :, :]         # (bt, K, K, E)
    z = jnp.where(z > 0, z, ALPHA * z)
    e = jnp.sum(z * a_row, axis=-1) + bias          # (bt, K, K)

    # --- Row softmax over j (dim=2 of the torch module), max-stabilized; EUP reciprocal. ---
    e = e - jnp.max(e, axis=-1, keepdims=True)
    p = jnp.exp(e)
    att = p * pl.reciprocal(jnp.sum(p, axis=-1, keepdims=True), approx=True)   # (bt, K, K)

    # --- Output: out[b, w, i] = sum_j x[b, w, j] * att[b, i, j]  (batched NT contraction). ---
    h = jnp.einsum("bwj,bij->bwi", x, att, preferred_element_type=jnp.float32)  # (bt, W, K)
    o_ref[...] = jax.nn.sigmoid(h).astype(o_ref.dtype)


def _pick_batch_tile(B, max_tile=32):
    """Largest divisor of B that is <= max_tile while keeping the grid >= 2 steps
    (so the 'parallel' axis can shard across v7x's two TensorCores)."""
    if B == 1:
        return 1
    best = 1
    for bt in range(1, min(B, max_tile) + 1):
        if B % bt == 0 and B // bt >= 2:
            best = bt
    return best


def _prep_params(params, W):
    lin_w = params["lin_w"]                                    # (E, 2W) torch Linear weight layout
    E = lin_w.shape[0]
    # Split the linear weight over the two concatenated halves; stack -> single weight operand.
    w12 = jnp.stack([lin_w[:, :W].T, lin_w[:, W:].T], axis=0)  # (2, W, E)
    # Stack the linear bias and the attention vector into one small constant operand.
    ba = jnp.stack([params["lin_b"], params["a"].reshape(E)], axis=0)  # (2, E)
    return w12, ba, params["bias"]


def feature_attention_layer(x, params, *, batch_tile=None):
    """x: (B, W, K) float32 — same argument layout as the PyTorch module."""
    B, W, K = x.shape
    bt = _pick_batch_tile(B) if batch_tile is None else batch_tile
    assert B % bt == 0, "batch_tile must divide the batch size"
    w12, ba, bias = _prep_params(params, W)
    E = ba.shape[1]
    return pl.pallas_call(
        _feature_attention_kernel,
        out_shape=jax.ShapeDtypeStruct((B, W, K), x.dtype),
        grid_spec=pltpu.PrefetchScalarGridSpec(
            num_scalar_prefetch=0,
            grid=(B // bt,),
            in_specs=[
                pl.BlockSpec((bt, W, K), lambda g: (g, 0, 0)),   # x (batch tile, native layout)
                pl.BlockSpec((2, W, E), lambda g: (0, 0, 0)),    # stacked W1/W2
                pl.BlockSpec((2, E), lambda g: (0, 0)),          # stacked [lin bias; a]
                pl.BlockSpec((K, K), lambda g: (0, 0)),          # attention bias
            ],
            out_specs=pl.BlockSpec((bt, W, K), lambda g: (g, 0, 0)),
        ),
        compiler_params=pltpu.CompilerParams(dimension_semantics=("parallel",)),
    )(x, w12, ba, bias)


def _ref_forward(x, params, alpha=ALPHA):
    """Pure-JAX reference mirroring the PyTorch forward (GATv2, use_bias=True, eval)."""
    B, W, K = x.shape
    lin_w, lin_b, a, bias = params["lin_w"], params["lin_b"], params["a"], params["bias"]
    xp = jnp.transpose(x, (0, 2, 1))                           # (B, K, W)
    rep = jnp.repeat(xp, K, axis=1)                            # repeat_interleave
    alt = jnp.tile(xp, (1, K, 1))                              # repeat
    a_input = jnp.concatenate([rep, alt], axis=2).reshape(B, K, K, 2 * W)
    lin_out = a_input @ lin_w.T + lin_b
    lin_out = jnp.where(lin_out > 0, lin_out, alpha * lin_out)
    e = (lin_out @ a)[..., 0] + bias                           # (B, K, K)
    att = jax.nn.softmax(e, axis=2)
    h = jax.nn.sigmoid(att @ xp)                               # (B, K, W)
    return jnp.transpose(h, (0, 2, 1))                         # (B, W, K)


def _init_params(key, n_features, window_size):
    K, W = n_features, window_size
    E = 2 * W                                    # embed_dim = window_size, doubled for GATv2
    k1, k2, k3, k4 = jax.random.split(key, 4)
    s_lin = np.sqrt(6.0 / (2 * W + E))
    lin_w = jax.random.uniform(k1, (E, 2 * W), jnp.float32, -s_lin, s_lin)
    lin_b = jax.random.uniform(k2, (E,), jnp.float32, -0.1, 0.1)
    s_a = 1.414 * np.sqrt(6.0 / (E + 1))
    a = jax.random.uniform(k3, (E, 1), jnp.float32, -s_a, s_a)
    bias = jax.random.normal(k4, (K, K), jnp.float32) * 0.05
    return {"lin_w": lin_w, "lin_b": lin_b, "a": a, "bias": bias}


if __name__ == "__main__":
    B, window_size, n_features = 2, 16, 8        # x: (batch, window, features)
    key = jax.random.PRNGKey(0)
    kx, kp = jax.random.split(key)
    x = jax.random.normal(kx, (B, window_size, n_features), jnp.float32)
    params = _init_params(kp, n_features, window_size)

    ref = _ref_forward(x, params)

    # Default path: bt chosen so the grid has >= 2 "parallel" steps (v7x dual-TC friendly).
    out = jax.block_until_ready(feature_attention_layer(x, params))
    assert out.shape == (B, window_size, n_features)
    # Tolerance relaxed to 1e-3 because the softmax denominator uses the EUP
    # approximate reciprocal (pl.reciprocal(approx=True)), per the perf review.
    np.testing.assert_allclose(np.asarray(out), np.asarray(ref), rtol=1e-3, atol=1e-3)

    # Also exercise the batch-folded single-step grid path (whole batch in one tile).
    out2 = jax.block_until_ready(feature_attention_layer(x, params, batch_tile=B))
    np.testing.assert_allclose(np.asarray(out2), np.asarray(ref), rtol=1e-3, atol=1e-3)

    print("KERNEL_OK")
</pallas_src>

<mosaic_0001>
module attributes {stable_mosaic.version = 11 : i64} {
  func.func @_feature_attention_kernel(%arg0: i32, %arg1: memref<1x16x8xf32, #tpu.memory_space<vmem>>, %arg2: memref<2x16x32xf32, #tpu.memory_space<vmem>>, %arg3: memref<2x32xf32, #tpu.memory_space<vmem>>, %arg4: memref<8x8xf32, #tpu.memory_space<vmem>>, %arg5: memref<1x16x8xf32, #tpu.memory_space<vmem>>) attributes {dimension_semantics = [#tpu.dimension_semantics<parallel>], iteration_bounds = array<i64: 2>, scalar_prefetch = 0 : i64, scratch_operands = 0 : i64, tpu.core_type = #tpu.core_type<tc>, window_params = [{transform_indices = @transform_0, window_bounds = array<i64: 1, 16, 8>}, {pipeline_mode = #tpu.pipeline_mode<synchronous>, transform_indices = @transform_1, window_bounds = array<i64: 2, 16, 32>}, {pipeline_mode = #tpu.pipeline_mode<synchronous>, transform_indices = @transform_2, window_bounds = array<i64: 2, 32>}, {pipeline_mode = #tpu.pipeline_mode<synchronous>, transform_indices = @transform_3, window_bounds = array<i64: 8, 8>}, {transform_indices = @transform_4, window_bounds = array<i64: 1, 16, 8>}]} {
    %c0 = arith.constant 0 : index
    %c0_0 = arith.constant 0 : index
    %c0_1 = arith.constant 0 : index
    %0 = vector.load %arg1[%c0, %c0_0, %c0_1] : memref<1x16x8xf32, #tpu.memory_space<vmem>>, vector<1x16x8xf32>
    %c0_2 = arith.constant 0 : index
    %c0_3 = arith.constant 0 : index
    %c0_4 = arith.constant 0 : index
    %1 = vector.load %arg2[%c0_2, %c0_3, %c0_4] : memref<2x16x32xf32, #tpu.memory_space<vmem>>, vector<1x16x32xf32>
    %2 = vector.shape_cast %1 : vector<1x16x32xf32> to vector<16x32xf32>
    %c1 = arith.constant 1 : index
    %c0_5 = arith.constant 0 : index
    %c0_6 = arith.constant 0 : index
    %3 = vector.load %arg2[%c1, %c0_5, %c0_6] : memref<2x16x32xf32, #tpu.memory_space<vmem>>, vector<1x16x32xf32>
    %4 = vector.shape_cast %3 : vector<1x16x32xf32> to vector<16x32xf32>
    %c0_7 = arith.constant 0 : index
    %c0_8 = arith.constant 0 : index
    %5 = vector.load %arg3[%c0_7, %c0_8] : memref<2x32xf32, #tpu.memory_space<vmem>>, vector<1x32xf32>
    %6 = vector.shape_cast %5 : vector<1x32xf32> to vector<32xf32>
    %c1_9 = arith.constant 1 : index
    %c0_10 = arith.constant 0 : index
    %7 = vector.load %arg3[%c1_9, %c0_10] : memref<2x32xf32, #tpu.memory_space<vmem>>, vector<1x32xf32>
    %8 = vector.shape_cast %7 : vector<1x32xf32> to vector<32xf32>
    %c0_11 = arith.constant 0 : index
    %c0_12 = arith.constant 0 : index
    %9 = vector.load %arg4[%c0_11, %c0_12] : memref<8x8xf32, #tpu.memory_space<vmem>>, vector<8x8xf32>
    %10 = tpu.transpose %0, [0, 2, 1] : vector<1x16x8xf32> -> vector<1x8x16xf32>
    %11 = vector.shape_cast %10 : vector<1x8x16xf32> to vector<8x16xf32>
    %cst = arith.constant dense<0.000000e+00> : vector<8x32xf32>
    %12 = tpu.matmul %11, %2, %cst {dimension_numbers = #tpu.dot_dimension_numbers<[1], [0], [0], [1], [0, 0, 1, 1], [], []>} : vector<8x16xf32>, vector<16x32xf32>, vector<8x32xf32> -> vector<8x32xf32>
    %13 = vector.shape_cast %6 : vector<32xf32> to vector<1x32xf32>
    %14 = vector.broadcast %13 : vector<1x32xf32> to vector<8x32xf32>
    %15 = arith.addf %12, %14 : vector<8x32xf32>
    %cst_13 = arith.constant dense<0.000000e+00> : vector<8x32xf32>
    %16 = tpu.matmul %11, %4, %cst_13 {dimension_numbers = #tpu.dot_dimension_numbers<[1], [0], [0], [1], [0, 0, 1, 1], [], []>} : vector<8x16xf32>, vector<16x32xf32>, vector<8x32xf32> -> vector<8x32xf32>
    %17 = vector.shape_cast %15 : vector<8x32xf32> to vector<1x8x32xf32>
    %18 = vector.shape_cast %16 : vector<8x32xf32> to vector<1x8x32xf32>
    %19 = vector.shape_cast %17 : vector<1x8x32xf32> to vector<1x8x1x32xf32>
    %20 = vector.shape_cast %18 : vector<1x8x32xf32> to vector<1x1x8x32xf32>
    %21 = vector.broadcast %19 : vector<1x8x1x32xf32> to vector<1x8x8x32xf32>
    %22 = vector.broadcast %20 : vector<1x1x8x32xf32> to vector<1x8x8x32xf32>
    %23 = arith.addf %21, %22 : vector<1x8x8x32xf32>
    %cst_14 = arith.constant 0.000000e+00 : f32
    %24 = vector.broadcast %cst_14 : f32 to vector<1x8x8x32xf32>
    %25 = arith.cmpf ogt, %23, %24 : vector<1x8x8x32xf32>
    %cst_15 = arith.constant 2.000000e-01 : f32
    %26 = vector.broadcast %cst_15 : f32 to vector<1x8x8x32xf32>
    %27 = arith.mulf %26, %23 : vector<1x8x8x32xf32>
    %28 = arith.select %25, %23, %27 : vector<1x8x8x32xi1>, vector<1x8x8x32xf32>
    %29 = vector.shape_cast %8 : vector<32xf32> to vector<1x1x1x32xf32>
    %30 = vector.broadcast %29 : vector<1x1x1x32xf32> to vector<1x8x8x32xf32>
    %31 = arith.mulf %28, %30 : vector<1x8x8x32xf32>
    %cst_16 = arith.constant dense<0.000000e+00> : vector<1x8x8xf32>
    %32 = vector.multi_reduction <add>, %31, %cst_16 [3] : vector<1x8x8x32xf32> to vector<1x8x8xf32>
    %33 = vector.shape_cast %9 : vector<8x8xf32> to vector<1x8x8xf32>
    %34 = arith.addf %32, %33 : vector<1x8x8xf32>
    %cst_17 = arith.constant dense<0xFF800000> : vector<1x8xf32>
    %35 = vector.multi_reduction <maximumf>, %34, %cst_17 [2] : vector<1x8x8xf32> to vector<1x8xf32>
    %36 = vector.shape_cast %35 : vector<1x8xf32> to vector<1x8x1xf32>
    %37 = vector.broadcast %36 : vector<1x8x1xf32> to vector<1x8x8xf32>
    %38 = arith.subf %34, %37 : vector<1x8x8xf32>
    %39 = math.exp %38 : vector<1x8x8xf32>
    %cst_18 = arith.constant dense<0.000000e+00> : vector<1x8xf32>
    %40 = vector.multi_reduction <add>, %39, %cst_18 [2] : vector<1x8x8xf32> to vector<1x8xf32>
    %41 = vector.shape_cast %40 : vector<1x8xf32> to vector<1x8x1xf32>
    %42 = tpu.reciprocal %41 {approx = true} : vector<1x8x1xf32> -> vector<1x8x1xf32>
    %43 = vector.broadcast %42 : vector<1x8x1xf32> to vector<1x8x8xf32>
    %44 = arith.mulf %39, %43 : vector<1x8x8xf32>
    "tpu.trace_start"() <{level = 10 : i32, message = "bwj,bij->bwi"}> : () -> ()
    %cst_19 = arith.constant dense<0.000000e+00> : vector<1x16x8xf32>
    %45 = tpu.matmul %0, %44, %cst_19 {dimension_numbers = #tpu.dot_dimension_numbers<[2], [2], [1], [1], [0, 0, 0, 1, 1, 1], [0], [0]>} : vector<1x16x8xf32>, vector<1x8x8xf32>, vector<1x16x8xf32> -> vector<1x16x8xf32>
    "tpu.trace_stop"() : () -> ()
    %46 = arith.negf %45 : vector<1x16x8xf32>
    %47 = math.exp %46 : vector<1x16x8xf32>
    %cst_20 = arith.constant 1.000000e+00 : f32
    %48 = vector.broadcast %cst_20 : f32 to vector<1x16x8xf32>
    %49 = arith.addf %48, %47 : vector<1x16x8xf32>
    %50 = arith.divf %48, %49 : vector<1x16x8xf32>
    %c0_21 = arith.constant 0 : index
    %c0_22 = arith.constant 0 : index
    %c0_23 = arith.constant 0 : index
    %51 = vector.load %arg5[%c0_21, %c0_22, %c0_23] : memref<1x16x8xf32, #tpu.memory_space<vmem>>, vector<1x16x8xf32>
    tpu.vector_store %arg5[%c0_21, %c0_22, %c0_23], %50 {strides = array<i32>} : memref<1x16x8xf32, #tpu.memory_space<vmem>>, vector<1x16x8xf32>,
    return
  }
  func.func @transform_0(%arg0: i32) -> (i32, i32, i32) {
    %c0_i32 = arith.constant 0 : i32
    %c0_i32_0 = arith.constant 0 : i32
    %c0_i32_1 = arith.constant 0 : i32
    return %arg0, %c0_i32, %c0_i32_0 : i32, i32, i32
  }
  func.func @transform_1(%arg0: i32) -> (i32, i32, i32) {
    %c0_i32 = arith.constant 0 : i32
    %c0_i32_0 = arith.constant 0 : i32
    %c0_i32_1 = arith.constant 0 : i32
    %c0_i32_2 = arith.constant 0 : i32
    return %c0_i32, %c0_i32_0, %c0_i32_1 : i32, i32, i32
  }
  func.func @transform_2(%arg0: i32) -> (i32, i32) {
    %c0_i32 = arith.constant 0 : i32
    %c0_i32_0 = arith.constant 0 : i32
    %c0_i32_1 = arith.constant 0 : i32
    return %c0_i32, %c0_i32_0 : i32, i32
  }
  func.func @transform_3(%arg0: i32) -> (i32, i32) {
    %c0_i32 = arith.constant 0 : i32
    %c0_i32_0 = arith.constant 0 : i32
    %c0_i32_1 = arith.constant 0 : i32
    return %c0_i32, %c0_i32_0 : i32, i32
  }
  func.func @transform_4(%arg0: i32) -> (i32, i32, i32) {
    %c0_i32 = arith.constant 0 : i32
    %c0_i32_0 = arith.constant 0 : i32
    %c0_i32_1 = arith.constant 0 : i32
    return %arg0, %c0_i32, %c0_i32_0 : i32, i32, i32
  }
}

</mosaic_0001>

<llo_original>
// kernel: tpu_custom_call.1
$region0: #{tpu_custom_call.1}
  #allocation0 [shape = 'u32[]', space=smem, size = 0x4, offset = 0x4, fixed_abs, tag = 'smem constant byte address 0x4 - core index']
  #allocation1 [shape = 'u32[144,128]{1,0:T(1,128)}', space=vmem, size = 0x12000, scoped, tag = 'internal scratch']
  %s0 = inlined_call_operand.vmem [shape: f32[2,16,8], index: 0, kind: input, shape index: {}]
  %s1 = inlined_call_operand.vmem [shape: f32[2,16,32], index: 1, kind: input, shape index: {}]
  %s2 = inlined_call_operand.vmem [shape: f32[2,32], index: 2, kind: input, shape index: {}]
  %s3 = inlined_call_operand.vmem [shape: f32[8,8], index: 3, kind: input, shape index: {}]
  %s4 = inlined_call_operand.vmem [shape: f32[2,16,8], index: 4, kind: output, shape index: {}]
  %s5 = sld [smem:[#allocation0]]
  $region49: #{tpu_custom_call.1} parent=0
    _
  %s7 = ssub.s32 1, %s5
  %s8 = scalar_select 0, %s7, %s5
  loop: start=0, step=1, limit=4
  $region2: #{tpu_custom_call.1} parent=0 // loop_pre_header
    _
  $region3: #{tpu_custom_call.1} parent=0 // loop_header
    %s10 = sphi 0, %s14
    %p11 = scmp.ge.s32.totalorder %s10, 4
    %s20 = sphi 0, %s22
    %s23 = sphi 0, %s20
    %s24 = sphi 0, %s23
    %s40 = sphi 0, %s24
    %s44 = sphi 0, %s44
    %s46 = sphi 0, %s44
    %s47 = sphi 0, %s46
    %s61 = sphi 0, %s47
    %s65 = sphi 0, %s65
    %s67 = sphi 0, %s65
    %s68 = sphi 0, %s67
    %s82 = sphi 0, %s68
    %s86 = sphi 0, %s86
    %s88 = sphi 0, %s86
    %s89 = sphi 0, %s88
    %s103 = sphi 0, %s89
    %s109 = sphi 0, %s111
    %s112 = sphi 0, %s109
    %s113 = sphi 0, %s112
    %s129 = sphi 0, %s113
  $region4: #{tpu_custom_call.1} parent=0 // loop_header_branch
    %13 = sbr.rel (%p11) target = $region8
  $region5: #{tpu_custom_call.1} parent=0 // loop_body
    %s15 = ssub.s32 %s10, 1
    %s16 = ssub.s32 %s10, 2
    %s17 = sadd.s32 %s10, 1
    %s18 = ssub.s32 %s10, %s17
    %p19 = scmp.eq.s32.totalorder %s18, 0
    %s21 = sadd.s32 %s20, 1
    %s22 = scalar_select %p19, %s20, %s21
    %p25 = pneg %p19
    %p26 = scmp.eq.s32.totalorder %s10, 1
    %p27 = por %p25, %p26
    %p28 = scmp.ne.s32.totalorder %s20, %s23
    %p29 = scmp.eq.s32.totalorder %s10, 0
    %p30 = por %p28, %p29
    %p31 = scmp.ne.s32.totalorder %s20, %s23
    %p32 = scmp.eq.s32.totalorder %s15, 1
    %p33 = por %p31, %p32
    %p34 = scmp.ne.s32.totalorder %s23, %s24
    %p35 = scmp.eq.s32.totalorder %s15, 0
    %p36 = por %p34, %p35
    %p37 = scmp.ne.s32.totalorder %s23, %s24
    %p38 = scmp.eq.s32.totalorder %s16, 1
    %p39 = por %p37, %p38
    %p41 = scmp.ne.s32.totalorder %s24, %s40
    %p42 = scmp.eq.s32.totalorder %s16, 0
    %p43 = por %p41, %p42
    %s45 = sadd.s32 %s44, 1
    %p48 = scmp.eq.s32.totalorder %s10, 1
    %p49 = scmp.ne.s32.totalorder %s44, %s46
    %p50 = scmp.eq.s32.totalorder %s10, 0
    %p51 = por %p49, %p50
    %p52 = scmp.ne.s32.totalorder %s44, %s46
    %p53 = scmp.eq.s32.totalorder %s15, 1
    %p54 = por %p52, %p53
    %p55 = scmp.ne.s32.totalorder %s46, %s47
    %p56 = scmp.eq.s32.totalorder %s15, 0
    %p57 = por %p55, %p56
    %p58 = scmp.ne.s32.totalorder %s46, %s47
    %p59 = scmp.eq.s32.totalorder %s16, 1
    %p60 = por %p58, %p59
    %p62 = scmp.ne.s32.totalorder %s47, %s61
    %p63 = scmp.eq.s32.totalorder %s16, 0
    %p64 = por %p62, %p63
    %s66 = sadd.s32 %s65, 1
    %p69 = scmp.eq.s32.totalorder %s10, 1
    %p70 = scmp.ne.s32.totalorder %s65, %s67
    %p71 = scmp.eq.s32.totalorder %s10, 0
    %p72 = por %p70, %p71
    %p73 = scmp.ne.s32.totalorder %s65, %s67
    %p74 = scmp.eq.s32.totalorder %s15, 1
    %p75 = por %p73, %p74
    %p76 = scmp.ne.s32.totalorder %s67, %s68
    %p77 = scmp.eq.s32.totalorder %s15, 0
    %p78 = por %p76, %p77
    %p79 = scmp.ne.s32.totalorder %s67, %s68
    %p80 = scmp.eq.s32.totalorder %s16, 1
    %p81 = por %p79, %p80
    %p83 = scmp.ne.s32.totalorder %s68, %s82
    %p84 = scmp.eq.s32.totalorder %s16, 0
    %p85 = por %p83, %p84
    %s87 = sadd.s32 %s86, 1
    %p90 = scmp.eq.s32.totalorder %s10, 1
    %p91 = scmp.ne.s32.totalorder %s86, %s88
    %p92 = scmp.eq.s32.totalorder %s10, 0
    %p93 = por %p91, %p92
    %p94 = scmp.ne.s32.totalorder %s86, %s88
    %p95 = scmp.eq.s32.totalorder %s15, 1
    %p96 = por %p94, %p95
    %p97 = scmp.ne.s32.totalorder %s88, %s89
    %p98 = scmp.eq.s32.totalorder %s15, 0
    %p99 = por %p97, %p98
    %p100 = scmp.ne.s32.totalorder %s88, %s89
    %p101 = scmp.eq.s32.totalorder %s16, 1
    %p102 = por %p100, %p101
    %p104 = scmp.ne.s32.totalorder %s89, %s103
    %p105 = scmp.eq.s32.totalorder %s16, 0
    %p106 = por %p104, %p105
    %s107 = ssub.s32 %s10, %s17
    %p108 = scmp.eq.s32.totalorder %s107, 0
    %s110 = sadd.s32 %s109, 1
    %s111 = scalar_select %p108, %s109, %s110
    %p114 = pneg %p108
    %p115 = scmp.eq.s32.totalorder %s10, 1
    %p116 = por %p114, %p115
    %p117 = scmp.ne.s32.totalorder %s109, %s112
    %p118 = scmp.eq.s32.totalorder %s10, 0
    %p119 = por %p117, %p118
    %p120 = scmp.ne.s32.totalorder %s109, %s112
    %p121 = scmp.eq.s32.totalorder %s15, 1
    %p122 = por %p120, %p121
    %p123 = scmp.ne.s32.totalorder %s112, %s113
    %p124 = scmp.eq.s32.totalorder %s15, 0
    %p125 = por %p123, %p124
    %p126 = scmp.ne.s32.totalorder %s112, %s113
    %p127 = scmp.eq.s32.totalorder %s16, 1
    %p128 = por %p126, %p127
    %p130 = scmp.ne.s32.totalorder %s113, %s129
    %p131 = scmp.eq.s32.totalorder %s16, 0
    %p132 = por %p130, %p131
    %p133 = scmp.le.s32.totalorder 1, %s10
    %p134 = scmp.lt.s32.totalorder %s10, 3
    %p135 = pnand %p133, %p134
    %p136 = pneg %p135
    // Predicated region
    $region9: #{tpu_custom_call.1} parent=5 // pred_check
      _
    $region10: #{tpu_custom_call.1} parent=5 // pred_check_branch
      %138 = sbr.rel (%p135) target = $region12
    $region11: #{tpu_custom_call.1} parent=5 // pred_region
      %s139 = ssub.s32 %s10, 1
      // Predicated region
      $region13: #{tpu_custom_call.1} parent=11 // pred_check
        %p140 = pneg %p57
      $region14: #{tpu_custom_call.1} parent=11 // pred_check_branch
        %142 = sbr.rel (%p140) target = $region16
      $region15: #{tpu_custom_call.1} parent=11 // pred_region
        _
      $region16: #{tpu_custom_call.1} parent=11 // pred_fallthru
        _
      // Predicated region
      $region17: #{tpu_custom_call.1} parent=11 // pred_check
        %p143 = pneg %p78
      $region18: #{tpu_custom_call.1} parent=11 // pred_check_branch
        %145 = sbr.rel (%p143) target = $region20
      $region19: #{tpu_custom_call.1} parent=11 // pred_region
        _
      $region20: #{tpu_custom_call.1} parent=11 // pred_fallthru
        _
      // Predicated region
      $region21: #{tpu_custom_call.1} parent=11 // pred_check
        %p146 = pneg %p99
      $region22: #{tpu_custom_call.1} parent=11 // pred_check_branch
        %148 = sbr.rel (%p146) target = $region24
      $region23: #{tpu_custom_call.1} parent=11 // pred_region
        _
      $region24: #{tpu_custom_call.1} parent=11 // pred_fallthru
        _
    $region12: #{tpu_custom_call.1} parent=5 // pred_fallthru
      _
    %p149 = scmp.lt.s32.totalorder %s10, 2
    // Predicated region
    $region25: #{tpu_custom_call.1} parent=5 // pred_check
      %p150 = pneg %p149
    $region26: #{tpu_custom_call.1} parent=5 // pred_check_branch
      %152 = sbr.rel (%p150) target = $region28
    $region27: #{tpu_custom_call.1} parent=5 // pred_region
      // Predicated region
      $region29: #{tpu_custom_call.1} parent=27 // pred_check
        %p153 = pneg %p30
      $region30: #{tpu_custom_call.1} parent=27 // pred_check_branch
        %155 = sbr.rel (%p153) target = $region32
      $region31: #{tpu_custom_call.1} parent=27 // pred_region
        %p156 = scmp.lt.s32.totalorder %s10, 1
        %s157 = scalar_select %p156, %s10, 1
        %s158 = smul.addr %s157, 2
        %s159 = smul.addr %s158, 8
        %s160 = scalar_lea.vmem %s0, %s159
      $region32: #{tpu_custom_call.1} parent=27 // pred_fallthru
        _
    $region28: #{tpu_custom_call.1} parent=5 // pred_fallthru
      _
    %p161 = scmp.le.s32.totalorder 1, %s10
    %p162 = scmp.lt.s32.totalorder %s10, 3
    %p163 = pnand %p161, %p162
    %p164 = pneg %p163
    // Predicated region
    $region33: #{tpu_custom_call.1} parent=5 // pred_check
      _
    $region34: #{tpu_custom_call.1} parent=5 // pred_check_branch
      %166 = sbr.rel (%p163) target = $region36
    $region35: #{tpu_custom_call.1} parent=5 // pred_region
      %s167 = ssub.s32 %s10, 1
      %p168 = scmp.lt.s32.totalorder %s15, 1
      %s169 = scalar_select %p168, %s15, 1
      %s170 = smul.addr %s169, 2
      %s171 = smul.addr %s170, 8
      %s172 = scalar_lea.vmem %s0, %s171
      %p173 = pneg %p36
      %p174 = pneg %p33
      %p175 = pneg %p57
      %p176 = pneg %p54
      %p177 = pneg %p78
      %p178 = pneg %p75
      %p179 = pneg %p99
      %p180 = pneg %p96
      %p181 = pneg %p125
      %p182 = pneg %p122
      %p183 = scmp.lt.s32.totalorder %s15, 1
      %s184 = scalar_select %p183, %s15, 1
      %s185 = smul.addr %s184, 2
      %s186 = smul.addr %s185, 8
      %s187 = scalar_lea.vmem %s4, %s186
      %p188 = scmp.lt.s32.totalorder %s15, 1
      %s189 = scalar_select %p188, %s15, 1
      %s190 = smul.addr %s189, 2
      %s191 = smul.addr %s190, 8
      %s192 = scalar_lea.vmem %s0, %s191
      %p193 = scmp.lt.s32.totalorder %s15, 1
      %s194 = scalar_select %p193, %s15, 1
      %s195 = smul.addr %s194, 2
      %s196 = smul.addr %s195, 8
      %s197 = scalar_lea.vmem %s4, %s196
      %v198 = vld [vmem:[%s192] sm:$0xff]
      %v199 = vld [vmem:[%s192 + $0x8] sm:$0xff]
      %v200 = vld [vmem:[%s1] sm:$0xff]
      %v201 = vld [vmem:[%s1 + $0x8] sm:$0xff]
      %s202 = scalar_lea.vmem %s1, 16
      %v203 = vld [vmem:[%s202] sm:$0xff]
      %v204 = vld [vmem:[%s202 + $0x8] sm:$0xff]
      %v205 = vld [vmem:[%s2] sm:$0x1]
      %v206 = vld [vmem:[%s2 + $0x1] sm:$0x1]
      %v207 = vld [vmem:[%s3] sm:$0xff]
      %208 = vxpose.xlu0.b32.start [1/16] %v198, 128
      %209 = vxpose.xlu0.b32.cont [2/16] %v199, 128
      %210 = vxpose.xlu0.b32.cont [3/16] 0.0, 128
      %211 = vxpose.xlu0.b32.cont [4/16] 0.0, 128
      %212 = vxpose.xlu0.b32.cont [5/16] 0.0, 128
      %213 = vxpose.xlu0.b32.cont [6/16] 0.0, 128
      %214 = vxpose.xlu0.b32.cont [7/16] 0.0, 128
      %215 = vxpose.xlu0.b32.cont [8/16] 0.0, 128
      %216 = vxpose.xlu0.b32.cont [9/16] 0.0, 128
      %217 = vxpose.xlu0.b32.cont [10/16] 0.0, 128
      %218 = vxpose.xlu0.b32.cont [11/16] 0.0, 128
      %219 = vxpose.xlu0.b32.cont [12/16] 0.0, 128
      %220 = vxpose.xlu0.b32.cont [13/16] 0.0, 128
      %221 = vxpose.xlu0.b32.cont [14/16] 0.0, 128
      %222 = vxpose.xlu0.b32.cont [15/16] 0.0, 128
      %223 = vxpose.xlu0.b32.end [16/16] 0.0, 128
      %v224 = vpop.trf.xlu0
      %v225 = vpop.trf.xlu0
      %v226 = vpop.trf.xlu0
      %v227 = vpop.trf.xlu0
      %v228 = vpop.trf.xlu0
      %v229 = vpop.trf.xlu0
      %v230 = vpop.trf.xlu0
      %v231 = vpop.trf.xlu0
      %v232 = vpop.trf.xlu0
      %v233 = vpop.trf.xlu0
      %v234 = vpop.trf.xlu0
      %v235 = vpop.trf.xlu0
      %v236 = vpop.trf.xlu0
      %v237 = vpop.trf.xlu0
      %v238 = vpop.trf.xlu0
      %v239 = vpop.trf.xlu0
      %v240 = vlaneseq
      %v241 = vshrl.u32 %v240, 7
      %v242 = vsub.s32 0, %v241
      %v243 = vrot.slane %v205, %v242
      %vm244 = vcmask 130048
      %v246 = vsel %vm244, %v224, 0
      %248 = vmatprep.subr.mxu0 0.0
      %249 = vmatpush1.msra.mxu0 %v200
      %250 = vmatprep.subr.mxu0 0.0
      %251 = vmatpush1.msra.mxu0 %v201
      %252 = vmatprep.subr.mxu0 0.0
      %253 = vmatpush1.msra.mxu0 0.0
      %254 = vmatprep.subr.mxu0 0.0
      %255 = vmatpush1.msra.mxu0 0.0
      %256 = vmatprep.subr.mxu0 0.0
      %257 = vmatpush1.msra.mxu0 0.0
      %258 = vmatprep.subr.mxu0 0.0
      %259 = vmatpush1.msra.mxu0 0.0
      %260 = vmatprep.subr.mxu0 0.0
      %261 = vmatpush1.msra.mxu0 0.0
      %262 = vmatprep.subr.mxu0 0.0
      %263 = vmatpush1.msra.mxu0 0.0
      %264 = vmatprep.subr.mxu0 0.0
      %265 = vmatpush1.msra.mxu0 0.0
      %266 = vmatprep.subr.mxu0 0.0
      %267 = vmatpush1.msra.mxu0 0.0
      %268 = vmatprep.subr.mxu0 0.0
      %269 = vmatpush1.msra.mxu0 0.0
      %270 = vmatprep.subr.mxu0 0.0
      %271 = vmatpush1.msra.mxu0 0.0
      %272 = vmatprep.subr.mxu0 0.0
      %273 = vmatpush1.msra.mxu0 0.0
      %274 = vmatprep.subr.mxu0 0.0
      %275 = vmatpush1.msra.mxu0 0.0
      %276 = vmatprep.subr.mxu0 0.0
      %277 = vmatpush1.msra.mxu0 0.0
      %278 = vmatprep.subr.mxu0 0.0
      %279 = vmatpush1.msra.mxu0 0.0
      %280 = vmatprep.subr.mxu0 0.0
      %281 = vmatpush1.msra.mxu0 0.0
      %282 = vmatprep.subr.mxu0 0.0
      %283 = vmatpush1.msra.mxu0 0.0
      %284 = vmatprep.subr.mxu0 0.0
      %285 = vmatpush1.msra.mxu0 0.0
      %286 = vmatprep.subr.mxu0 0.0
      %287 = vmatpush1.msra.mxu0 0.0
      %288 = vmatprep.subr.mxu0 0.0
      %289 = vmatpush1.msra.mxu0 0.0
      %290 = vmatprep.subr.mxu0 0.0
      %291 = vmatpush1.msra.mxu0 0.0
      %292 = vmatprep.subr.mxu0 0.0
      %293 = vmatpush1.msra.mxu0 0.0
      %294 = vmatprep.subr.mxu0 0.0
      %295 = vmatpush1.msra.mxu0 0.0
      %296 = vmatprep.subr.mxu0 0.0
      %297 = vmatpush1.msra.mxu0 0.0
      %298 = vmatprep.subr.mxu0 0.0
      %299 = vmatpush1.msra.mxu0 0.0
      %300 = vmatprep.subr.mxu0 0.0
      %301 = vmatpush1.msra.mxu0 0.0
      %302 = vmatprep.subr.mxu0 0.0
      %303 = vmatpush1.msra.mxu0 0.0
      %304 = vmatprep.subr.mxu0 0.0
      %305 = vmatpush1.msra.mxu0 0.0
      %306 = vmatprep.subr.mxu0 0.0
      %307 = vmatpush1.msra.mxu0 0.0
      %308 = vmatprep.subr.mxu0 0.0
      %309 = vmatpush1.msra.mxu0 0.0
      %310 = vmatprep.subr.mxu0 0.0
      %311 = vmatpush1.msra.mxu0 0.0
      %312 = vmatprep.mubr.f32.mxu0 0.0
      %313 = vmatmul.mubr.f32.gmra.mrb[0].mxu0 %v246
      %v314 = vpop.f32.mrb[0].mxu0
      %v315 = vadd.f32 %v243, %v314
      %v316 = vpop.f32.mrb[0].mxu0
      %317 = vdwg.mxu0
      %318 = vmatprep.subr.mxu0 0.0
      %319 = vmatpush1.msra.mxu0 %v203
      %320 = vmatprep.subr.mxu0 0.0
      %321 = vmatpush1.msra.mxu0 %v204
      %322 = vmatprep.subr.mxu0 0.0
      %323 = vmatpush1.msra.mxu0 0.0
      %324 = vmatprep.subr.mxu0 0.0
      %325 = vmatpush1.msra.mxu0 0.0
      %326 = vmatprep.subr.mxu0 0.0
      %327 = vmatpush1.msra.mxu0 0.0
      %328 = vmatprep.subr.mxu0 0.0
      %329 = vmatpush1.msra.mxu0 0.0
      %330 = vmatprep.subr.mxu0 0.0
      %331 = vmatpush1.msra.mxu0 0.0
      %332 = vmatprep.subr.mxu0 0.0
      %333 = vmatpush1.msra.mxu0 0.0
      %334 = vmatprep.subr.mxu0 0.0
      %335 = vmatpush1.msra.mxu0 0.0
      %336 = vmatprep.subr.mxu0 0.0
      %337 = vmatpush1.msra.mxu0 0.0
      %338 = vmatprep.subr.mxu0 0.0
      %339 = vmatpush1.msra.mxu0 0.0
      %340 = vmatprep.subr.mxu0 0.0
      %341 = vmatpush1.msra.mxu0 0.0
      %342 = vmatprep.subr.mxu0 0.0
      %343 = vmatpush1.msra.mxu0 0.0
      %344 = vmatprep.subr.mxu0 0.0
      %345 = vmatpush1.msra.mxu0 0.0
      %346 = vmatprep.subr.mxu0 0.0
      %347 = vmatpush1.msra.mxu0 0.0
      %348 = vmatprep.subr.mxu0 0.0
      %349 = vmatpush1.msra.mxu0 0.0
      %350 = vmatprep.subr.mxu0 0.0
      %351 = vmatpush1.msra.mxu0 0.0
      %352 = vmatprep.subr.mxu0 0.0
      %353 = vmatpush1.msra.mxu0 0.0
      %354 = vmatprep.subr.mxu0 0.0
      %355 = vmatpush1.msra.mxu0 0.0
      %356 = vmatprep.subr.mxu0 0.0
      %357 = vmatpush1.msra.mxu0 0.0
      %358 = vmatprep.subr.mxu0 0.0
      %359 = vmatpush1.msra.mxu0 0.0
      %360 = vmatprep.subr.mxu0 0.0
      %361 = vmatpush1.msra.mxu0 0.0
      %362 = vmatprep.subr.mxu0 0.0
      %363 = vmatpush1.msra.mxu0 0.0
      %364 = vmatprep.subr.mxu0 0.0
      %365 = vmatpush1.msra.mxu0 0.0
      %366 = vmatprep.subr.mxu0 0.0
      %367 = vmatpush1.msra.mxu0 0.0
      %368 = vmatprep.subr.mxu0 0.0
      %369 = vmatpush1.msra.mxu0 0.0
      %370 = vmatprep.subr.mxu0 0.0
      %371 = vmatpush1.msra.mxu0 0.0
      %372 = vmatprep.subr.mxu0 0.0
      %373 = vmatpush1.msra.mxu0 0.0
      %374 = vmatprep.subr.mxu0 0.0
      %375 = vmatpush1.msra.mxu0 0.0
      %376 = vmatprep.subr.mxu0 0.0
      %377 = vmatpush1.msra.mxu0 0.0
      %378 = vmatprep.subr.mxu0 0.0
      %379 = vmatpush1.msra.mxu0 0.0
      %380 = vmatprep.subr.mxu0 0.0
      %381 = vmatpush1.msra.mxu0 0.0
      %382 = vmatprep.mubr.f32.mxu0 0.0
      %383 = vmatmul.mubr.f32.gmra.mrb[0].mxu0 %v246
      %v384 = vpop.f32.mrb[0].mxu0
      %v385 = vadd.f32 0.0, %v384
      %v386 = vpop.f32.mrb[0].mxu0
      %387 = vdwg.mxu0
      %v389 = vcombine.high %v315, %v315
      %v391 = vunpack.c.l.s4 1966171168
      %v392 = vunpack.c.0.s8 %v391
      %v393 = vlaneseq
      %v394 = vshrl.u32 %v393, 7
      %v395 = vsub.s32 %v392, %v394
      %v396 = vrot.slane %v315, %v395
      %v398 = vunpack.c.l.s4 1966171168
      %v399 = vunpack.c.0.s8 %v398
      %v400 = vlaneseq
      %v401 = vshrl.u32 %v400, 7
      %v402 = vsub.s32 %v399, %v401
      %v403 = vrot.slane %v389, %v402
      %v404 = vcombine.high %v396, %v396
      %v405 = vcombine.high %v403, %v403
      %v407 = vunpack.c.l.s4 1966171168
      %v408 = vunpack.c.0.s8 %v407
      %v409 = vlaneseq
      %v410 = vshrl.u32 %v409, 7
      %v411 = vsub.s32 %v408, %v410
      %v412 = vrot.slane %v396, %v411
      %v414 = vunpack.c.l.s4 1966171168
      %v415 = vunpack.c.0.s8 %v414
      %v416 = vlaneseq
      %v417 = vshrl.u32 %v416, 7
      %v418 = vsub.s32 %v415, %v417
      %v419 = vrot.slane %v403, %v418
      %v421 = vunpack.c.l.s4 1966171168
      %v422 = vunpack.c.0.s8 %v421
      %v423 = vlaneseq
      %v424 = vshrl.u32 %v423, 7
      %v425 = vsub.s32 %v422, %v424
      %v426 = vrot.slane %v404, %v425
      %v428 = vunpack.c.l.s4 1966171168
      %v429 = vunpack.c.0.s8 %v428
      %v430 = vlaneseq
      %v431 = vshrl.u32 %v430, 7
      %v432 = vsub.s32 %v429, %v431
      %v433 = vrot.slane %v405, %v432
      %v434 = vcombine.high %v412, %v412
      %v435 = vcombine.high %v419, %v419
      %v436 = vcombine.high %v426, %v426
      %v437 = vcombine.high %v433, %v433
      %v438 = vlaneseq
      %v439 = vshrl.u32 %v438, 7
      %v440 = vsub.s32 0, %v439
      %v441 = vrot.slane %v412, %v440
      %v442 = vlaneseq
      %v443 = vshrl.u32 %v442, 7
      %v444 = vsub.s32 0, %v443
      %v445 = vrot.slane %v426, %v444
      %v446 = vlaneseq
      %v447 = vshrl.u32 %v446, 7
      %v448 = vsub.s32 0, %v447
      %v449 = vrot.slane %v434, %v448
      %v450 = vlaneseq
      %v451 = vshrl.u32 %v450, 7
      %v452 = vsub.s32 0, %v451
      %v453 = vrot.slane %v436, %v452
      %v454 = vlaneseq
      %v455 = vshrl.u32 %v454, 7
      %v456 = vsub.s32 0, %v455
      %v457 = vrot.slane %v419, %v456
      %v458 = vlaneseq
      %v459 = vshrl.u32 %v458, 7
      %v460 = vsub.s32 0, %v459
      %v461 = vrot.slane %v433, %v460
      %v462 = vlaneseq
      %v463 = vshrl.u32 %v462, 7
      %v464 = vsub.s32 0, %v463
      %v465 = vrot.slane %v435, %v464
      %v466 = vlaneseq
      %v467 = vshrl.u32 %v466, 7
      %v468 = vsub.s32 0, %v467
      %v469 = vrot.slane %v437, %v468
      %v478 = vadd.f32 %v441, %v385
      %v479 = vadd.f32 %v445, %v385
      %v480 = vadd.f32 %v449, %v385
      %v481 = vadd.f32 %v453, %v385
      %v482 = vadd.f32 %v457, %v385
      %v483 = vadd.f32 %v461, %v385
      %v484 = vadd.f32 %v465, %v385
      %v485 = vadd.f32 %v469, %v385
      %vm486 = vcmp.gt.f32.partialorder %v478, 0.0
      %vm487 = vcmp.gt.f32.partialorder %v479, 0.0
      %vm488 = vcmp.gt.f32.partialorder %v480, 0.0
      %vm489 = vcmp.gt.f32.partialorder %v481, 0.0
      %vm490 = vcmp.gt.f32.partialorder %v482, 0.0
      %vm491 = vcmp.gt.f32.partialorder %v483, 0.0
      %vm492 = vcmp.gt.f32.partialorder %v484, 0.0
      %vm493 = vcmp.gt.f32.partialorder %v485, 0.0
      %v494 = vmul.f32 %v478, 0.2
      %v495 = vmul.f32 %v479, 0.2
      %v496 = vmul.f32 %v480, 0.2
      %v497 = vmul.f32 %v481, 0.2
      %v498 = vmul.f32 %v482, 0.2
      %v499 = vmul.f32 %v483, 0.2
      %v500 = vmul.f32 %v484, 0.2
      %v501 = vmul.f32 %v485, 0.2
      %v502 = vsel %vm486, %v478, %v494
      %v503 = vsel %vm487, %v479, %v495
      %v504 = vsel %vm488, %v480, %v496
      %v505 = vsel %vm489, %v481, %v497
      %v506 = vsel %vm490, %v482, %v498
      %v507 = vsel %vm491, %v483, %v499
      %v508 = vsel %vm492, %v484, %v500
      %v509 = vsel %vm493, %v485, %v501
      %v510 = vlaneseq
      %v511 = vshrl.u32 %v510, 7
      %v512 = vsub.s32 0, %v511
      %v513 = vrot.slane %v206, %v512
      %v514 = vmul.f32 %v502, %v513
      %v515 = vmul.f32 %v503, %v513
      %v516 = vmul.f32 %v504, %v513
      %v517 = vmul.f32 %v505, %v513
      %v518 = vmul.f32 %v506, %v513
      %v519 = vmul.f32 %v507, %v513
      %v520 = vmul.f32 %v508, %v513
      %v521 = vmul.f32 %v509, %v513
      %vm522 = vcmask 261120
      %v523 = vsel %vm522, %v514, 0.0
      %524 = vadd.xlane.f32.xlu0 %v523
      %v525 = vpop.xlane.xlu0 %524
      %v526 = vsel %vm522, %v515, 0.0
      %527 = vadd.xlane.f32.xlu0 %v526
      %v528 = vpop.xlane.xlu0 %527
      %v529 = vsel %vm522, %v516, 0.0
      %530 = vadd.xlane.f32.xlu0 %v529
      %v531 = vpop.xlane.xlu0 %530
      %v532 = vsel %vm522, %v517, 0.0
      %533 = vadd.xlane.f32.xlu0 %v532
      %v534 = vpop.xlane.xlu0 %533
      %v535 = vsel %vm522, %v518, 0.0
      %536 = vadd.xlane.f32.xlu0 %v535
      %v537 = vpop.xlane.xlu0 %536
      %v538 = vsel %vm522, %v519, 0.0
      %539 = vadd.xlane.f32.xlu0 %v538
      %v540 = vpop.xlane.xlu0 %539
      %v541 = vsel %vm522, %v520, 0.0
      %542 = vadd.xlane.f32.xlu0 %v541
      %v543 = vpop.xlane.xlu0 %542
      %v544 = vsel %vm522, %v521, 0.0
      %545 = vadd.xlane.f32.xlu0 %v544
      %v546 = vpop.xlane.xlu0 %545
      %v548 = vlaneseq
      %v549 = vshrl.u32 %v548, 7
      %v550 = vsub.s32 0, %v549
      %v551 = vrot.slane %v207, %v550
      %553 = vbcast.lane.b32.xlu0 %v551, 256
      %v554 = vpop.permute.xlu0 %553
      %v555 = vlaneseq
      %v556 = vshrl.u32 %v555, 7
      %v557 = vsub.s32 1, %v556
      %v558 = vrot.slane %v207, %v557
      %560 = vbcast.lane.b32.xlu0 %v558, 256
      %v561 = vpop.permute.xlu0 %560
      %v562 = vlaneseq
      %v563 = vshrl.u32 %v562, 7
      %v564 = vsub.s32 2, %v563
      %v565 = vrot.slane %v207, %v564
      %567 = vbcast.lane.b32.xlu0 %v565, 256
      %v568 = vpop.permute.xlu0 %567
      %v569 = vlaneseq
      %v570 = vshrl.u32 %v569, 7
      %v571 = vsub.s32 3, %v570
      %v572 = vrot.slane %v207, %v571
      %574 = vbcast.lane.b32.xlu0 %v572, 256
      %v575 = vpop.permute.xlu0 %574
      %v576 = vlaneseq
      %v577 = vshrl.u32 %v576, 7
      %v578 = vsub.s32 4, %v577
      %v579 = vrot.slane %v207, %v578
      %581 = vbcast.lane.b32.xlu0 %v579, 256
      %v582 = vpop.permute.xlu0 %581
      %v583 = vlaneseq
      %v584 = vshrl.u32 %v583, 7
      %v585 = vsub.s32 5, %v584
      %v586 = vrot.slane %v207, %v585
      %588 = vbcast.lane.b32.xlu0 %v586, 256
      %v589 = vpop.permute.xlu0 %588
      %v590 = vlaneseq
      %v591 = vshrl.u32 %v590, 7
      %v592 = vsub.s32 6, %v591
      %v593 = vrot.slane %v207, %v592
      %595 = vbcast.lane.b32.xlu0 %v593, 256
      %v596 = vpop.permute.xlu0 %595
      %v597 = vlaneseq
      %v598 = vshrl.u32 %v597, 7
      %v599 = vsub.s32 7, %v598
      %v600 = vrot.slane %v207, %v599
      %602 = vbcast.lane.b32.xlu0 %v600, 256
      %v603 = vpop.permute.xlu0 %602
      %v612 = vadd.f32 %v525, %v554
      %v613 = vadd.f32 %v528, %v561
      %v614 = vadd.f32 %v531, %v568
      %v615 = vadd.f32 %v534, %v575
      %v616 = vadd.f32 %v537, %v582
      %v617 = vadd.f32 %v540, %v589
      %v618 = vadd.f32 %v543, %v596
      %v619 = vadd.f32 %v546, %v603
      %628 = vset.pattern.permute.xlu0 0
      %629 = vperm.xlu0 %628, %v612
      %v630 = vpop.permute.xlu0 %629
      %631 = vset.pattern.permute.xlu0 0
      %632 = vperm.xlu0 %631, %v613
      %v633 = vpop.permute.xlu0 %632
      %634 = vset.pattern.permute.xlu0 0
      %635 = vperm.xlu0 %634, %v614
      %v636 = vpop.permute.xlu0 %635
      %637 = vset.pattern.permute.xlu0 0
      %638 = vperm.xlu0 %637, %v615
      %v639 = vpop.permute.xlu0 %638
      %640 = vset.pattern.permute.xlu0 0
      %641 = vperm.xlu0 %640, %v616
      %v642 = vpop.permute.xlu0 %641
      %643 = vset.pattern.permute.xlu0 0
      %644 = vperm.xlu0 %643, %v617
      %v645 = vpop.permute.xlu0 %644
      %646 = vset.pattern.permute.xlu0 0
      %647 = vperm.xlu0 %646, %v618
      %v648 = vpop.permute.xlu0 %647
      %649 = vset.pattern.permute.xlu0 0
      %650 = vperm.xlu0 %649, %v619
      %v651 = vpop.permute.xlu0 %650
      %v652 = vlaneseq
      %v653 = vand.u32 %v652, 127
      %v654 = vlaneseq
      %v655 = vshrl.u32 %v654, 7
      %v656 = vsub.s32 %v653, %v655
      %v657 = vrot.slane %v630, %v656
      %v658 = vlaneseq
      %v659 = vshrl.u32 %v658, 7
      %v660 = vsub.s32 %v653, %v659
      %v661 = vrot.slane %v633, %v660
      %v662 = vlaneseq
      %v663 = vshrl.u32 %v662, 7
      %v664 = vsub.s32 %v653, %v663
      %v665 = vrot.slane %v636, %v664
      %v666 = vlaneseq
      %v667 = vshrl.u32 %v666, 7
      %v668 = vsub.s32 %v653, %v667
      %v669 = vrot.slane %v639, %v668
      %v670 = vlaneseq
      %v671 = vshrl.u32 %v670, 7
      %v672 = vsub.s32 %v653, %v671
      %v673 = vrot.slane %v642, %v672
      %v674 = vlaneseq
      %v675 = vshrl.u32 %v674, 7
      %v676 = vsub.s32 %v653, %v675
      %v677 = vrot.slane %v645, %v676
      %v678 = vlaneseq
      %v679 = vshrl.u32 %v678, 7
      %v680 = vsub.s32 %v653, %v679
      %v681 = vrot.slane %v648, %v680
      %v682 = vlaneseq
      %v683 = vshrl.u32 %v682, 7
      %v684 = vsub.s32 %v653, %v683
      %v685 = vrot.slane %v651, %v684
      %vm686 = vcmask 1041409
      %v687 = vsel %vm686, %v661, %v657
      %vm688 = vcmask 1042434
      %v689 = vsel %vm688, %v665, %v687
      %vm690 = vcmask 1043459
      %v691 = vsel %vm690, %v669, %v689
      %vm692 = vcmask 1044484
      %v693 = vsel %vm692, %v673, %v691
      %vm694 = vcmask 1045509
      %v695 = vsel %vm694, %v677, %v693
      %vm696 = vcmask 1046534
      %v697 = vsel %vm696, %v681, %v695
      %vm698 = vcmask 1047559
      %v699 = vsel %vm698, %v685, %v697
      %vm701 = vcmask 64512
      %v702 = vsel %vm701, %v699, -inf
      %703 = vmax.xlane.f32.xlu0 %v702
      %v704 = vpop.xlane.xlu0 %703
      %v706 = vlaneseq
      %v707 = vshrl.u32 %v706, 7
      %v708 = vsub.s32 0, %v707
      %v709 = vrot.slane %v704, %v708
      %v710 = vlaneseq
      %v711 = vshrl.u32 %v710, 7
      %v712 = vsub.s32 1, %v711
      %v713 = vrot.slane %v704, %v712
      %v714 = vlaneseq
      %v715 = vshrl.u32 %v714, 7
      %v716 = vsub.s32 2, %v715
      %v717 = vrot.slane %v704, %v716
      %v718 = vlaneseq
      %v719 = vshrl.u32 %v718, 7
      %v720 = vsub.s32 3, %v719
      %v721 = vrot.slane %v704, %v720
      %v722 = vlaneseq
      %v723 = vshrl.u32 %v722, 7
      %v724 = vsub.s32 4, %v723
      %v725 = vrot.slane %v704, %v724
      %v726 = vlaneseq
      %v727 = vshrl.u32 %v726, 7
      %v728 = vsub.s32 5, %v727
      %v729 = vrot.slane %v704, %v728
      %v730 = vlaneseq
      %v731 = vshrl.u32 %v730, 7
      %v732 = vsub.s32 6, %v731
      %v733 = vrot.slane %v704, %v732
      %v734 = vlaneseq
      %v735 = vshrl.u32 %v734, 7
      %v736 = vsub.s32 7, %v735
      %v737 = vrot.slane %v704, %v736
      %v746 = vsub.f32 %v612, %v709
      %v747 = vsub.f32 %v613, %v713
      %v748 = vsub.f32 %v614, %v717
      %v749 = vsub.f32 %v615, %v721
      %v750 = vsub.f32 %v616, %v725
      %v751 = vsub.f32 %v617, %v729
      %v752 = vsub.f32 %v618, %v733
      %v753 = vsub.f32 %v619, %v737
      %v754 = vmul.f32 %v746, 1.442695
      %v755 = vpow.pop %v754
      %v756 = vmul.f32 %v747, 1.442695
      %v757 = vpow.pop %v756
      %v758 = vmul.f32 %v748, 1.442695
      %v759 = vpow.pop %v758
      %v760 = vmul.f32 %v749, 1.442695
      %v761 = vpow.pop %v760
      %v762 = vmul.f32 %v750, 1.442695
      %v763 = vpow.pop %v762
      %v764 = vmul.f32 %v751, 1.442695
      %v765 = vpow.pop %v764
      %v766 = vmul.f32 %v752, 1.442695
      %v767 = vpow.pop %v766
      %v768 = vmul.f32 %v753, 1.442695
      %v769 = vpow.pop %v768
      %778 = vset.pattern.permute.xlu0 0
      %779 = vperm.xlu0 %778, %v755
      %v780 = vpop.permute.xlu0 %779
      %781 = vset.pattern.permute.xlu0 0
      %782 = vperm.xlu0 %781, %v757
      %v783 = vpop.permute.xlu0 %782
      %784 = vset.pattern.permute.xlu0 0
      %785 = vperm.xlu0 %784, %v759
      %v786 = vpop.permute.xlu0 %785
      %787 = vset.pattern.permute.xlu0 0
      %788 = vperm.xlu0 %787, %v761
      %v789 = vpop.permute.xlu0 %788
      %790 = vset.pattern.permute.xlu0 0
      %791 = vperm.xlu0 %790, %v763
      %v792 = vpop.permute.xlu0 %791
      %793 = vset.pattern.permute.xlu0 0
      %794 = vperm.xlu0 %793, %v765
      %v795 = vpop.permute.xlu0 %794
      %796 = vset.pattern.permute.xlu0 0
      %797 = vperm.xlu0 %796, %v767
      %v798 = vpop.permute.xlu0 %797
      %799 = vset.pattern.permute.xlu0 0
      %800 = vperm.xlu0 %799, %v769
      %v801 = vpop.permute.xlu0 %800
      %v802 = vlaneseq
      %v803 = vshrl.u32 %v802, 7
      %v804 = vsub.s32 %v653, %v803
      %v805 = vrot.slane %v780, %v804
      %v806 = vlaneseq
      %v807 = vshrl.u32 %v806, 7
      %v808 = vsub.s32 %v653, %v807
      %v809 = vrot.slane %v783, %v808
      %v810 = vlaneseq
      %v811 = vshrl.u32 %v810, 7
      %v812 = vsub.s32 %v653, %v811
      %v813 = vrot.slane %v786, %v812
      %v814 = vlaneseq
      %v815 = vshrl.u32 %v814, 7
      %v816 = vsub.s32 %v653, %v815
      %v817 = vrot.slane %v789, %v816
      %v818 = vlaneseq
      %v819 = vshrl.u32 %v818, 7
      %v820 = vsub.s32 %v653, %v819
      %v821 = vrot.slane %v792, %v820
      %v822 = vlaneseq
      %v823 = vshrl.u32 %v822, 7
      %v824 = vsub.s32 %v653, %v823
      %v825 = vrot.slane %v795, %v824
      %v826 = vlaneseq
      %v827 = vshrl.u32 %v826, 7
      %v828 = vsub.s32 %v653, %v827
      %v829 = vrot.slane %v798, %v828
      %v830 = vlaneseq
      %v831 = vshrl.u32 %v830, 7
      %v832 = vsub.s32 %v653, %v831
      %v833 = vrot.slane %v801, %v832
      %v834 = vsel %vm686, %v809, %v805
      %v835 = vsel %vm688, %v813, %v834
      %v836 = vsel %vm690, %v817, %v835
      %v837 = vsel %vm692, %v821, %v836
      %v838 = vsel %vm694, %v825, %v837
      %v839 = vsel %vm696, %v829, %v838
      %v840 = vsel %vm698, %v833, %v839
      %v842 = vsel %vm701, %v840, 0.0
      %843 = vadd.xlane.f32.xlu0 %v842
      %v844 = vpop.xlane.xlu0 %843
      %v845 = vrcp.pop %v844
      %v847 = vlaneseq
      %v848 = vshrl.u32 %v847, 7
      %v849 = vsub.s32 0, %v848
      %v850 = vrot.slane %v845, %v849
      %v851 = vlaneseq
      %v852 = vshrl.u32 %v851, 7
      %v853 = vsub.s32 1, %v852
      %v854 = vrot.slane %v845, %v853
      %v855 = vlaneseq
      %v856 = vshrl.u32 %v855, 7
      %v857 = vsub.s32 2, %v856
      %v858 = vrot.slane %v845, %v857
      %v859 = vlaneseq
      %v860 = vshrl.u32 %v859, 7
      %v861 = vsub.s32 3, %v860
      %v862 = vrot.slane %v845, %v861
      %v863 = vlaneseq
      %v864 = vshrl.u32 %v863, 7
      %v865 = vsub.s32 4, %v864
      %v866 = vrot.slane %v845, %v865
      %v867 = vlaneseq
      %v868 = vshrl.u32 %v867, 7
      %v869 = vsub.s32 5, %v868
      %v870 = vrot.slane %v845, %v869
      %v871 = vlaneseq
      %v872 = vshrl.u32 %v871, 7
      %v873 = vsub.s32 6, %v872
      %v874 = vrot.slane %v845, %v873
      %v875 = vlaneseq
      %v876 = vshrl.u32 %v875, 7
      %v877 = vsub.s32 7, %v876
      %v878 = vrot.slane %v845, %v877
      %v887 = vmul.f32 %v755, %v850
      %v888 = vmul.f32 %v757, %v854
      %v889 = vmul.f32 %v759, %v858
      %v890 = vmul.f32 %v761, %v862
      %v891 = vmul.f32 %v763, %v866
      %v892 = vmul.f32 %v765, %v870
      %v893 = vmul.f32 %v767, %v874
      %v894 = vmul.f32 %v769, %v878
      %903 = vset.pattern.permute.xlu0 0
      %904 = vperm.xlu0 %903, %v887
      %v905 = vpop.permute.xlu0 %904
      %906 = vset.pattern.permute.xlu0 0
      %907 = vperm.xlu0 %906, %v888
      %v908 = vpop.permute.xlu0 %907
      %909 = vset.pattern.permute.xlu0 0
      %910 = vperm.xlu0 %909, %v889
      %v911 = vpop.permute.xlu0 %910
      %912 = vset.pattern.permute.xlu0 0
      %913 = vperm.xlu0 %912, %v890
      %v914 = vpop.permute.xlu0 %913
      %915 = vset.pattern.permute.xlu0 0
      %916 = vperm.xlu0 %915, %v891
      %v917 = vpop.permute.xlu0 %916
      %918 = vset.pattern.permute.xlu0 0
      %919 = vperm.xlu0 %918, %v892
      %v920 = vpop.permute.xlu0 %919
      %921 = vset.pattern.permute.xlu0 0
      %922 = vperm.xlu0 %921, %v893
      %v923 = vpop.permute.xlu0 %922
      %924 = vset.pattern.permute.xlu0 0
      %925 = vperm.xlu0 %924, %v894
      %v926 = vpop.permute.xlu0 %925
      %v927 = vlaneseq
      %v928 = vshrl.u32 %v927, 7
      %v929 = vsub.s32 %v653, %v928
      %v930 = vrot.slane %v905, %v929
      %v931 = vlaneseq
      %v932 = vshrl.u32 %v931, 7
      %v933 = vsub.s32 %v653, %v932
      %v934 = vrot.slane %v908, %v933
      %v935 = vlaneseq
      %v936 = vshrl.u32 %v935, 7
      %v937 = vsub.s32 %v653, %v936
      %v938 = vrot.slane %v911, %v937
      %v939 = vlaneseq
      %v940 = vshrl.u32 %v939, 7
      %v941 = vsub.s32 %v653, %v940
      %v942 = vrot.slane %v914, %v941
      %v943 = vlaneseq
      %v944 = vshrl.u32 %v943, 7
      %v945 = vsub.s32 %v653, %v944
      %v946 = vrot.slane %v917, %v945
      %v947 = vlaneseq
      %v948 = vshrl.u32 %v947, 7
      %v949 = vsub.s32 %v653, %v948
      %v950 = vrot.slane %v920, %v949
      %v951 = vlaneseq
      %v952 = vshrl.u32 %v951, 7
      %v953 = vsub.s32 %v653, %v952
      %v954 = vrot.slane %v923, %v953
      %v955 = vlaneseq
      %v956 = vshrl.u32 %v955, 7
      %v957 = vsub.s32 %v653, %v956
      %v958 = vrot.slane %v926, %v957
      %v959 = vsel %vm686, %v934, %v930
      %v960 = vsel %vm688, %v938, %v959
      %v961 = vsel %vm690, %v942, %v960
      %v962 = vsel %vm692, %v946, %v961
      %v963 = vsel %vm694, %v950, %v962
      %v964 = vsel %vm696, %v954, %v963
      %v965 = vsel %vm698, %v958, %v964
      %v967 = vsel %vm701, %v198, 0
      %v970 = vsel %vm701, %v199, 0
      %v972 = vsel %vm701, %v965, 0
      %974 = vmatprep.subr.mxu0 0.0
      %975 = vmatpush1.xpose.msra.mxu0 %v972
      %976 = vmatprep.subr.mxu0 0.0
      %977 = vmatpush1.xpose.msra.mxu0 0.0
      %978 = vmatprep.subr.mxu0 0.0
      %979 = vmatpush1.xpose.msra.mxu0 0.0
      %980 = vmatprep.subr.mxu0 0.0
      %981 = vmatpush1.xpose.msra.mxu0 0.0
      %982 = vmatprep.subr.mxu0 0.0
      %983 = vmatpush1.xpose.msra.mxu0 0.0
      %984 = vmatprep.subr.mxu0 0.0
      %985 = vmatpush1.xpose.msra.mxu0 0.0
      %986 = vmatprep.subr.mxu0 0.0
      %987 = vmatpush1.xpose.msra.mxu0 0.0
      %988 = vmatprep.subr.mxu0 0.0
      %989 = vmatpush1.xpose.msra.mxu0 0.0
      %990 = vmatprep.subr.mxu0 0.0
      %991 = vmatpush1.xpose.msra.mxu0 0.0
      %992 = vmatprep.subr.mxu0 0.0
      %993 = vmatpush1.xpose.msra.mxu0 0.0
      %994 = vmatprep.subr.mxu0 0.0
      %995 = vmatpush1.xpose.msra.mxu0 0.0
      %996 = vmatprep.subr.mxu0 0.0
      %997 = vmatpush1.xpose.msra.mxu0 0.0
      %998 = vmatprep.subr.mxu0 0.0
      %999 = vmatpush1.xpose.msra.mxu0 0.0
      %1000 = vmatprep.subr.mxu0 0.0
      %1001 = vmatpush1.xpose.msra.mxu0 0.0
      %1002 = vmatprep.subr.mxu0 0.0
      %1003 = vmatpush1.xpose.msra.mxu0 0.0
      %1004 = vmatprep.subr.mxu0 0.0
      %1005 = vmatpush1.xpose.msra.mxu0 0.0
      %1006 = vmatprep.subr.mxu0 0.0
      %1007 = vmatpush1.xpose.msra.mxu0 0.0
      %1008 = vmatprep.subr.mxu0 0.0
      %1009 = vmatpush1.xpose.msra.mxu0 0.0
      %1010 = vmatprep.subr.mxu0 0.0
      %1011 = vmatpush1.xpose.msra.mxu0 0.0
      %1012 = vmatprep.subr.mxu0 0.0
      %1013 = vmatpush1.xpose.msra.mxu0 0.0
      %1014 = vmatprep.subr.mxu0 0.0
      %1015 = vmatpush1.xpose.msra.mxu0 0.0
      %1016 = vmatprep.subr.mxu0 0.0
      %1017 = vmatpush1.xpose.msra.mxu0 0.0
      %1018 = vmatprep.subr.mxu0 0.0
      %1019 = vmatpush1.xpose.msra.mxu0 0.0
      %1020 = vmatprep.subr.mxu0 0.0
      %1021 = vmatpush1.xpose.msra.mxu0 0.0
      %1022 = vmatprep.subr.mxu0 0.0
      %1023 = vmatpush1.xpose.msra.mxu0 0.0
      %1024 = vmatprep.subr.mxu0 0.0
      %1025 = vmatpush1.xpose.msra.mxu0 0.0
      %1026 = vmatprep.subr.mxu0 0.0
      %1027 = vmatpush1.xpose.msra.mxu0 0.0
      %1028 = vmatprep.subr.mxu0 0.0
      %1029 = vmatpush1.xpose.msra.mxu0 0.0
      %1030 = vmatprep.subr.mxu0 0.0
      %1031 = vmatpush1.xpose.msra.mxu0 0.0
      %1032 = vmatprep.subr.mxu0 0.0
      %1033 = vmatpush1.xpose.msra.mxu0 0.0
      %1034 = vmatprep.subr.mxu0 0.0
      %1035 = vmatpush1.xpose.msra.mxu0 0.0
      %1036 = vmatprep.subr.mxu0 0.0
      %1037 = vmatpush1.xpose.msra.mxu0 0.0
      %1038 = vmatprep.mubr.f32.mxu0 0.0
      %1039 = vmatmul.mubr.f32.gmra.mrb[0].mxu0 %v967
      %v1040 = vpop.f32.mrb[0].mxu0
      %v1041 = vadd.f32 0.0, %v1040
      %v1042 = vpop.f32.mrb[0].mxu0
      %1043 = vmatprep.mubr.f32.mxu0 0.0
      %1044 = vmatmul.mubr.f32.gmra.mrb[0].mxu0 %v970
      %v1045 = vpop.f32.mrb[0].mxu0
      %v1046 = vadd.f32 0.0, %v1045
      %v1047 = vpop.f32.mrb[0].mxu0
      %1048 = vdwg.mxu0
      %v1049 = vxor.u32 %v1041, 2147483648
      %v1050 = vxor.u32 %v1046, 2147483648
      %v1051 = vmul.f32 %v1049, 1.442695
      %v1052 = vpow.pop %v1051
      %v1053 = vmul.f32 %v1050, 1.442695
      %v1054 = vpow.pop %v1053
      %v1055 = vadd.f32 %v1052, 1.0
      %v1056 = vadd.f32 %v1054, 1.0
      %v1057 = vrcp.pop %v1055
      %v1058 = vmul.f32 1.0, %v1057
      %v1059 = vrcp.pop %v1056
      %v1060 = vmul.f32 1.0, %v1059
      %1061 = vst.msk [vmem:[%s197] sm:$0xff] %vm701, %v1058
      %1062 = vst.msk [vmem:[%s197 + $0x8] sm:$0xff] %vm701, %v1060
      %p1063 = scmp.lt.s32.totalorder %s15, 1
      %s1064 = scalar_select %p1063, %s15, 1
      %s1065 = smul.addr %s1064, 2
      %s1066 = smul.addr %s1065, 8
      %s1067 = scalar_lea.vmem %s4, %s1066
      // Predicated region
      $region37: #{tpu_custom_call.1} parent=35 // pred_check
        %p1068 = pneg %p122
      $region38: #{tpu_custom_call.1} parent=35 // pred_check_branch
        %1070 = sbr.rel (%p1068) target = $region40
      $region39: #{tpu_custom_call.1} parent=35 // pred_region
        _
      $region40: #{tpu_custom_call.1} parent=35 // pred_fallthru
        _
    $region36: #{tpu_custom_call.1} parent=5 // pred_fallthru
      _
    %p1071 = scmp.le.s32.totalorder 2, %s10
    // Predicated region
    $region41: #{tpu_custom_call.1} parent=5 // pred_check
      %p1072 = pneg %p1071
    $region42: #{tpu_custom_call.1} parent=5 // pred_check_branch
      %1074 = sbr.rel (%p1072) target = $region44
    $region43: #{tpu_custom_call.1} parent=5 // pred_region
      %s1075 = ssub.s32 %s10, 2
      // Predicated region
      $region45: #{tpu_custom_call.1} parent=43 // pred_check
        %p1076 = pneg %p128
      $region46: #{tpu_custom_call.1} parent=43 // pred_check_branch
        %1078 = sbr.rel (%p1076) target = $region48
      $region47: #{tpu_custom_call.1} parent=43 // pred_region
        %p1079 = scmp.lt.s32.totalorder %s16, 1
        %s1080 = scalar_select %p1079, %s16, 1
        %s1081 = smul.addr %s1080, 2
        %s1082 = smul.addr %s1081, 8
        %s1083 = scalar_lea.vmem %s4, %s1082
      $region48: #{tpu_custom_call.1} parent=43 // pred_fallthru
        _
    $region44: #{tpu_custom_call.1} parent=5 // pred_fallthru
      _
  $region6: #{tpu_custom_call.1} parent=0 // loop_footer
    %s14 = sadd.s32 1, %s10
  $region7: #{tpu_custom_call.1} parent=0 // loop_footer_branch
    %9 = sbr.rel target = $region3
  $region8: #{tpu_custom_call.1} parent=0 // loop_exit
    _

</llo_original>
